<compile_context>
chip_gen: v7x
topology: tpu7x:2x2x1
jax: 0.10.0
libtpu: 0.0.40
codegen_flags: <defaults>
</compile_context>

<pallas_src>
import jax
import jax.numpy as jnp
from jax.experimental import pallas as pl
from jax.experimental.pallas import tpu as pltpu


def _resnet_block_kernel(x_ref, w1_ref, b1_ref, w2_ref, b2_ref, o_ref):
    # x_ref / o_ref: (1, Cp, T) — channels on sublanes, pixels lane-dense.
    # w*_ref: (Cp, Cp) effective (BN-folded) 1x1 conv weights (matmul dtype).
    # b*_ref: (Cp, 1) effective biases, f32.
    x = x_ref[0]                                    # (Cp, T)
    xf = x.astype(jnp.float32)
    mm = w1_ref.dtype                               # matmul operand dtype

    # conv1 (1x1, BN1 folded) + ReLU — MXU matmul with f32 accumulation.
    h = jnp.dot(w1_ref[...], x.astype(mm), preferred_element_type=jnp.float32)
    h = jnp.maximum(h + b1_ref[...], 0.0)           # elementwise stays f32 (v5e)

    # conv2 (1x1, BN2 folded)
    h = jnp.dot(w2_ref[...], h.astype(mm), preferred_element_type=jnp.float32)
    h = h + b2_ref[...]

    # residual add; single lane-dense store.
    o_ref[0] = (h + xf).astype(o_ref.dtype)


def _round_up(a, m):
    return -(-a // m) * m


def _vmem_capacity_bytes():
    """Physical VMEM per TensorCore (v5e/v6e: 128 MiB, v7x: 64 MiB)."""
    try:
        return int(pltpu.get_tpu_info().vmem_capacity_bytes)
    except Exception:
        return 64 << 20          # conservative fallback (v7x per-TC VMEM)


def _pick_pixel_tile(hwp, cp, n, act_bytes, fixed_bytes, budget_bytes):
    """Largest multiple-of-128 divisor of hwp whose double-buffered in+out
    tiles (4 * cp * T * act_bytes) fit the VMEM budget left over after the
    weight/bias blocks, preferring a grid with >= 2 total programs so the
    second TensorCore on v7x has work (costs at most one extra ~0.35us step
    on single-TC chips)."""
    avail = max(budget_bytes - fixed_bytes, 0)
    cap_t = avail // max(4 * cp * act_bytes, 1)
    cap_t = max(128, (cap_t // 128) * 128)
    candidates = [t for t in range(128, hwp + 1, 128) if hwp % t == 0]
    want_tiles = 1 if n >= 2 else 2
    for min_tiles in (want_tiles, 1):
        ok = [t for t in candidates if t <= cap_t and hwp // t >= min_tiles]
        if ok:
            return max(ok)
    return 128


def resnet_block_forward(x, w1, b1, bn1_params, w2, b2, bn2_params,
                         eps=1e-5, matmul_dtype="auto"):
    """ResNetBlock forward (kernel_size=1, inference-mode BatchNorm).

    x            : (N, C, H, W)
    w1, w2       : (C, C)  1x1 conv weights (squeezed from (C, C, 1, 1))
    b1, b2       : (C,)    conv biases
    bn*_params   : (gamma, beta, running_mean, running_var), each (C,)
    matmul_dtype : "auto" -> bf16 dot operands when C >= 512 (compute-bound,
                   bf16-native MXU on v6e/v7x), else x.dtype; or pass a dtype.
    """
    N, C, H, W = x.shape
    HW = H * W

    # --- fold BatchNorm (+ conv bias) into effective 1x1 weights/bias -------
    def fold(w, b, bn):
        gamma, beta, mean, var = bn
        s = (gamma / jnp.sqrt(var + eps)).astype(jnp.float32)       # (C,)
        w_eff = w.astype(jnp.float32) * s[:, None]                  # out-ch scale
        b_eff = (b.astype(jnp.float32) - mean) * s + beta
        return w_eff, b_eff

    w1e, b1e = fold(w1, b1, bn1_params)
    w2e, b2e = fold(w2, b2, bn2_params)

    # --- pad channels to a sublane multiple (8) and pixels to a lane multiple
    #     (128) so every load/store is dense --------------------------------
    Cp = max(8, _round_up(C, 8))
    HWp = _round_up(HW, 128)
    x2 = x.reshape(N, C, HW)
    if Cp != C or HWp != HW:
        x2 = jnp.pad(x2, ((0, 0), (0, Cp - C), (0, HWp - HW)))
    if Cp != C:
        w1e = jnp.pad(w1e, ((0, Cp - C), (0, Cp - C)))
        w2e = jnp.pad(w2e, ((0, Cp - C), (0, Cp - C)))
        b1e = jnp.pad(b1e, (0, Cp - C))
        b2e = jnp.pad(b2e, (0, Cp - C))
    b1e = b1e[:, None]                   # (Cp, 1) — lane-broadcast, f32
    b2e = b2e[:, None]

    # --- matmul operand dtype ------------------------------------------------
    if matmul_dtype == "auto":
        mm_dtype = jnp.bfloat16 if (Cp >= 512 and x.dtype == jnp.float32) \
            else x.dtype
    else:
        mm_dtype = matmul_dtype
    w1e = w1e.astype(mm_dtype)
    w2e = w2e.astype(mm_dtype)

    # --- generation-aware VMEM budget: weights + biases + in/out tiles -------
    vmem_cap = _vmem_capacity_bytes()
    budget = max(8 << 20, vmem_cap // 2)            # leave compiler headroom
    w_bytes = jnp.dtype(mm_dtype).itemsize
    act_bytes = jnp.dtype(x.dtype).itemsize
    # Budget weight/bias blocks as double-buffered even though Buffered(1) is
    # requested (keeps us safe if the single-buffer request is ignored).
    fixed_bytes = 2 * (2 * Cp * Cp * w_bytes + 2 * Cp * 4)
    # TODO(synk): for very large C (>= ~2048 f32 on v7x's 64 MiB VMEM) the full
    # (Cp, Cp) weights cannot coexist with activation tiles; a channel-blocked
    # grid axis with an f32 VMEM accumulator would be required.
    T = _pick_pixel_tile(HWp, Cp, N, act_bytes, fixed_bytes, budget)
    grid = (N, HWp // T)

    required = fixed_bytes + 4 * Cp * T * act_bytes
    vmem_limit = int(min(vmem_cap, max(32 << 20, required + (4 << 20))))

    out_shape = jax.ShapeDtypeStruct((N, Cp, HWp), x.dtype)
    x_spec = pl.BlockSpec((1, Cp, T), lambda n, t: (n, 0, t))
    o_spec = pl.BlockSpec((1, Cp, T), lambda n, t: (n, 0, t))
    params = pltpu.CompilerParams(
        dimension_semantics=("parallel", "parallel"),   # megacore sharding
        vmem_limit_bytes=vmem_limit,
    )

    def call(single_buffer_consts):
        def const_spec(shape):
            if single_buffer_consts:
                # Constant index_map -> double-buffering is pure VMEM waste;
                # single-buffer the weights/biases.
                return pl.BlockSpec(shape, lambda n, t: (0, 0),
                                    pipeline_mode=pl.Buffered(1))
            return pl.BlockSpec(shape, lambda n, t: (0, 0))

        return pl.pallas_call(
            _resnet_block_kernel,
            out_shape=out_shape,
            grid=grid,
            in_specs=[
                x_spec,
                const_spec((Cp, Cp)), const_spec((Cp, 1)),
                const_spec((Cp, Cp)), const_spec((Cp, 1)),
            ],
            out_specs=o_spec,
            compiler_params=params,
        )(x2, w1e, b1e, w2e, b2e)

    try:
        out = call(True)
    except Exception:
        # Fallback for environments where BlockSpec(pipeline_mode=...) /
        # Buffered(1) is unavailable — correctness over the VMEM saving.
        out = call(False)

    return out[:, :C, :HW].reshape(N, C, H, W)


def resnet_block_reference(x, w1, b1, bn1, w2, b2, bn2, eps=1e-5):
    """Pure-JAX unfused reference mirroring the PyTorch module (eval mode)."""
    def conv1x1(z, w, b):
        return jnp.einsum("nchw,oc->nohw", z, w) + b[None, :, None, None]

    def bn(z, p):
        gamma, beta, mean, var = p
        inv = gamma / jnp.sqrt(var + eps)
        return (z - mean[None, :, None, None]) * inv[None, :, None, None] \
            + beta[None, :, None, None]

    skip = x
    h = jax.nn.relu(bn(conv1x1(x, w1, b1), bn1))
    h = bn(conv1x1(h, w2, b2), bn2)
    return h + skip


if __name__ == "__main__":
    N, C, H, W = 2, 4, 16, 16          # small NCHW input; kernel_size = 1

    key = jax.random.PRNGKey(0)
    ks = jax.random.split(key, 13)
    x = jax.random.normal(ks[0], (N, C, H, W), dtype=jnp.float32)

    w1 = jax.random.normal(ks[1], (C, C), dtype=jnp.float32) * 0.3
    b1 = jax.random.normal(ks[2], (C,), dtype=jnp.float32) * 0.1
    w2 = jax.random.normal(ks[3], (C, C), dtype=jnp.float32) * 0.3
    b2 = jax.random.normal(ks[4], (C,), dtype=jnp.float32) * 0.1

    bn1 = (jax.random.uniform(ks[5], (C,), minval=0.5, maxval=1.5),
           jax.random.normal(ks[6], (C,), dtype=jnp.float32) * 0.1,
           jax.random.normal(ks[7], (C,), dtype=jnp.float32) * 0.1,
           jax.random.uniform(ks[8], (C,), minval=0.5, maxval=1.5))
    bn2 = (jax.random.uniform(ks[9], (C,), minval=0.5, maxval=1.5),
           jax.random.normal(ks[10], (C,), dtype=jnp.float32) * 0.1,
           jax.random.normal(ks[11], (C,), dtype=jnp.float32) * 0.1,
           jax.random.uniform(ks[12], (C,), minval=0.5, maxval=1.5))

    out = resnet_block_forward(x, w1, b1, bn1, w2, b2, bn2)
    out = jax.block_until_ready(out)

    ref = resnet_block_reference(x, w1, b1, bn1, w2, b2, bn2)
    assert out.shape == (N, C, H, W), out.shape
    assert jnp.allclose(out, ref, atol=1e-4, rtol=1e-4), \
        f"mismatch vs reference, max err {jnp.max(jnp.abs(out - ref))}"

    print("KERNEL_OK")
</pallas_src>

<mosaic_0001>
module attributes {stable_mosaic.version = 11 : i64} {
  func.func @_resnet_block_kernel(%arg0: i32, %arg1: i32, %arg2: memref<1x8x256xf32, #tpu.memory_space<vmem>>, %arg3: memref<8x8xf32, #tpu.memory_space<vmem>>, %arg4: memref<8x1xf32, #tpu.memory_space<vmem>>, %arg5: memref<8x8xf32, #tpu.memory_space<vmem>>, %arg6: memref<8x1xf32, #tpu.memory_space<vmem>>, %arg7: memref<1x8x256xf32, #tpu.memory_space<vmem>>) attributes {dimension_semantics = [#tpu.dimension_semantics<parallel>, #tpu.dimension_semantics<parallel>], iteration_bounds = array<i64: 2, 1>, scalar_prefetch = 0 : i64, scratch_operands = 0 : i64, tpu.core_type = #tpu.core_type<tc>, window_params = [{transform_indices = @transform_0, window_bounds = array<i64: 1, 8, 256>}, {pipeline_mode = #tpu.pipeline_mode<synchronous>, transform_indices = @transform_1, window_bounds = array<i64: 8, 8>}, {pipeline_mode = #tpu.pipeline_mode<synchronous>, transform_indices = @transform_2, window_bounds = array<i64: 8, 1>}, {pipeline_mode = #tpu.pipeline_mode<synchronous>, transform_indices = @transform_3, window_bounds = array<i64: 8, 8>}, {pipeline_mode = #tpu.pipeline_mode<synchronous>, transform_indices = @transform_4, window_bounds = array<i64: 8, 1>}, {transform_indices = @transform_5, window_bounds = array<i64: 1, 8, 256>}]} {
    %c0 = arith.constant 0 : index
    %c0_0 = arith.constant 0 : index
    %c0_1 = arith.constant 0 : index
    %0 = vector.load %arg2[%c0, %c0_0, %c0_1] : memref<1x8x256xf32, #tpu.memory_space<vmem>>, vector<1x8x256xf32>
    %1 = vector.shape_cast %0 : vector<1x8x256xf32> to vector<8x256xf32>
    %c0_2 = arith.constant 0 : index
    %c0_3 = arith.constant 0 : index
    %2 = vector.load %arg3[%c0_2, %c0_3] : memref<8x8xf32, #tpu.memory_space<vmem>>, vector<8x8xf32>
    %cst = arith.constant dense<0.000000e+00> : vector<8x256xf32>
    %3 = tpu.matmul %2, %1, %cst {dimension_numbers = #tpu.dot_dimension_numbers<[1], [0], [0], [1], [0, 0, 1, 1], [], []>} : vector<8x8xf32>, vector<8x256xf32>, vector<8x256xf32> -> vector<8x256xf32>
    %c0_4 = arith.constant 0 : index
    %c0_5 = arith.constant 0 : index
    %4 = vector.load %arg4[%c0_4, %c0_5] : memref<8x1xf32, #tpu.memory_space<vmem>>, vector<8x1xf32>
    %5 = vector.broadcast %4 : vector<8x1xf32> to vector<8x256xf32>
    %6 = arith.addf %3, %5 : vector<8x256xf32>
    %cst_6 = arith.constant 0.000000e+00 : f32
    %7 = vector.broadcast %cst_6 : f32 to vector<8x256xf32>
    %8 = arith.maximumf %6, %7 : vector<8x256xf32>
    %c0_7 = arith.constant 0 : index
    %c0_8 = arith.constant 0 : index
    %9 = vector.load %arg5[%c0_7, %c0_8] : memref<8x8xf32, #tpu.memory_space<vmem>>, vector<8x8xf32>
    %cst_9 = arith.constant dense<0.000000e+00> : vector<8x256xf32>
    %10 = tpu.matmul %9, %8, %cst_9 {dimension_numbers = #tpu.dot_dimension_numbers<[1], [0], [0], [1], [0, 0, 1, 1], [], []>} : vector<8x8xf32>, vector<8x256xf32>, vector<8x256xf32> -> vector<8x256xf32>
    %c0_10 = arith.constant 0 : index
    %c0_11 = arith.constant 0 : index
    %11 = vector.load %arg6[%c0_10, %c0_11] : memref<8x1xf32, #tpu.memory_space<vmem>>, vector<8x1xf32>
    %12 = vector.broadcast %11 : vector<8x1xf32> to vector<8x256xf32>
    %13 = arith.addf %10, %12 : vector<8x256xf32>
    %14 = arith.addf %13, %1 : vector<8x256xf32>
    %c0_12 = arith.constant 0 : index
    %c0_13 = arith.constant 0 : index
    %c0_14 = arith.constant 0 : index
    %15 = vector.load %arg7[%c0_12, %c0_13, %c0_14] : memref<1x8x256xf32, #tpu.memory_space<vmem>>, vector<1x8x256xf32>
    %16 = vector.shape_cast %15 : vector<1x8x256xf32> to vector<8x256xf32>
    %17 = vector.shape_cast %14 : vector<8x256xf32> to vector<1x8x256xf32>
    tpu.vector_store %arg7[%c0_12, %c0_13, %c0_14], %17 {strides = array<i32>} : memref<1x8x256xf32, #tpu.memory_space<vmem>>, vector<1x8x256xf32>,
    return
  }
  func.func @transform_0(%arg0: i32, %arg1: i32) -> (i32, i32, i32) {
    %c0_i32 = arith.constant 0 : i32
    %c0_i32_0 = arith.constant 0 : i32
    return %arg0, %c0_i32, %arg1 : i32, i32, i32
  }
  func.func @transform_1(%arg0: i32, %arg1: i32) -> (i32, i32) {
    %c0_i32 = arith.constant 0 : i32
    %c0_i32_0 = arith.constant 0 : i32
    %c0_i32_1 = arith.constant 0 : i32
    return %c0_i32, %c0_i32_0 : i32, i32
  }
  func.func @transform_2(%arg0: i32, %arg1: i32) -> (i32, i32) {
    %c0_i32 = arith.constant 0 : i32
    %c0_i32_0 = arith.constant 0 : i32
    %c0_i32_1 = arith.constant 0 : i32
    return %c0_i32, %c0_i32_0 : i32, i32
  }
  func.func @transform_3(%arg0: i32, %arg1: i32) -> (i32, i32) {
    %c0_i32 = arith.constant 0 : i32
    %c0_i32_0 = arith.constant 0 : i32
    %c0_i32_1 = arith.constant 0 : i32
    return %c0_i32, %c0_i32_0 : i32, i32
  }
  func.func @transform_4(%arg0: i32, %arg1: i32) -> (i32, i32) {
    %c0_i32 = arith.constant 0 : i32
    %c0_i32_0 = arith.constant 0 : i32
    %c0_i32_1 = arith.constant 0 : i32
    return %c0_i32, %c0_i32_0 : i32, i32
  }
  func.func @transform_5(%arg0: i32, %arg1: i32) -> (i32, i32, i32) {
    %c0_i32 = arith.constant 0 : i32
    %c0_i32_0 = arith.constant 0 : i32
    return %arg0, %c0_i32, %arg1 : i32, i32, i32
  }
}

module attributes {stable_mosaic.version = 11 : i64} {
  func.func @_resnet_block_kernel(%arg0: i32, %arg1: i32, %arg2: memref<1x8x256xf32, #tpu.memory_space<vmem>>, %arg3: memref<8x8xf32, #tpu.memory_space<vmem>>, %arg4: memref<8x1xf32, #tpu.memory_space<vmem>>, %arg5: memref<8x8xf32, #tpu.memory_space<vmem>>, %arg6: memref<8x1xf32, #tpu.memory_space<vmem>>, %arg7: memref<1x8x256xf32, #tpu.memory_space<vmem>>) attributes {dimension_semantics = [#tpu.dimension_semantics<parallel>, #tpu.dimension_semantics<parallel>], iteration_bounds = array<i64: 2, 1>, scalar_prefetch = 0 : i64, scratch_operands = 0 : i64, tpu.core_type = #tpu.core_type<tc>, window_params = [{transform_indices = @transform_0, window_bounds = array<i64: 1, 8, 256>}, {pipeline_mode = #tpu.pipeline_mode<synchronous>, transform_indices = @transform_1, window_bounds = array<i64: 8, 8>}, {pipeline_mode = #tpu.pipeline_mode<synchronous>, transform_indices = @transform_2, window_bounds = array<i64: 8, 1>}, {pipeline_mode = #tpu.pipeline_mode<synchronous>, transform_indices = @transform_3, window_bounds = array<i64: 8, 8>}, {pipeline_mode = #tpu.pipeline_mode<synchronous>, transform_indices = @transform_4, window_bounds = array<i64: 8, 1>}, {transform_indices = @transform_5, window_bounds = array<i64: 1, 8, 256>}]} {
    %c0 = arith.constant 0 : index
    %c0_0 = arith.constant 0 : index
    %c0_1 = arith.constant 0 : index
    %0 = vector.load %arg2[%c0, %c0_0, %c0_1] : memref<1x8x256xf32, #tpu.memory_space<vmem>>, vector<1x8x256xf32>
    %1 = vector.shape_cast %0 : vector<1x8x256xf32> to vector<8x256xf32>
    %c0_2 = arith.constant 0 : index
    %c0_3 = arith.constant 0 : index
    %2 = vector.load %arg3[%c0_2, %c0_3] : memref<8x8xf32, #tpu.memory_space<vmem>>, vector<8x8xf32>
    %cst = arith.constant dense<0.000000e+00> : vector<8x256xf32>
    %3 = tpu.matmul %2, %1, %cst {dimension_numbers = #tpu.dot_dimension_numbers<[1], [0], [0], [1], [0, 0, 1, 1], [], []>} : vector<8x8xf32>, vector<8x256xf32>, vector<8x256xf32> -> vector<8x256xf32>
    %c0_4 = arith.constant 0 : index
    %c0_5 = arith.constant 0 : index
    %4 = vector.load %arg4[%c0_4, %c0_5] : memref<8x1xf32, #tpu.memory_space<vmem>>, vector<8x1xf32>
    %5 = vector.broadcast %4 : vector<8x1xf32> to vector<8x256xf32>
    %6 = arith.addf %3, %5 : vector<8x256xf32>
    %cst_6 = arith.constant 0.000000e+00 : f32
    %7 = vector.broadcast %cst_6 : f32 to vector<8x256xf32>
    %8 = arith.maximumf %6, %7 : vector<8x256xf32>
    %c0_7 = arith.constant 0 : index
    %c0_8 = arith.constant 0 : index
    %9 = vector.load %arg5[%c0_7, %c0_8] : memref<8x8xf32, #tpu.memory_space<vmem>>, vector<8x8xf32>
    %cst_9 = arith.constant dense<0.000000e+00> : vector<8x256xf32>
    %10 = tpu.matmul %9, %8, %cst_9 {dimension_numbers = #tpu.dot_dimension_numbers<[1], [0], [0], [1], [0, 0, 1, 1], [], []>} : vector<8x8xf32>, vector<8x256xf32>, vector<8x256xf32> -> vector<8x256xf32>
    %c0_10 = arith.constant 0 : index
    %c0_11 = arith.constant 0 : index
    %11 = vector.load %arg6[%c0_10, %c0_11] : memref<8x1xf32, #tpu.memory_space<vmem>>, vector<8x1xf32>
    %12 = vector.broadcast %11 : vector<8x1xf32> to vector<8x256xf32>
    %13 = arith.addf %10, %12 : vector<8x256xf32>
    %14 = arith.addf %13, %1 : vector<8x256xf32>
    %c0_12 = arith.constant 0 : index
    %c0_13 = arith.constant 0 : index
    %c0_14 = arith.constant 0 : index
    %15 = vector.load %arg7[%c0_12, %c0_13, %c0_14] : memref<1x8x256xf32, #tpu.memory_space<vmem>>, vector<1x8x256xf32>
    %16 = vector.shape_cast %15 : vector<1x8x256xf32> to vector<8x256xf32>
    %17 = vector.shape_cast %14 : vector<8x256xf32> to vector<1x8x256xf32>
    tpu.vector_store %arg7[%c0_12, %c0_13, %c0_14], %17 {strides = array<i32>} : memref<1x8x256xf32, #tpu.memory_space<vmem>>, vector<1x8x256xf32>,
    return
  }
  func.func @transform_0(%arg0: i32, %arg1: i32) -> (i32, i32, i32) {
    %c0_i32 = arith.constant 0 : i32
    %c0_i32_0 = arith.constant 0 : i32
    return %arg0, %c0_i32, %arg1 : i32, i32, i32
  }
  func.func @transform_1(%arg0: i32, %arg1: i32) -> (i32, i32) {
    %c0_i32 = arith.constant 0 : i32
    %c0_i32_0 = arith.constant 0 : i32
    %c0_i32_1 = arith.constant 0 : i32
    return %c0_i32, %c0_i32_0 : i32, i32
  }
  func.func @transform_2(%arg0: i32, %arg1: i32) -> (i32, i32) {
    %c0_i32 = arith.constant 0 : i32
    %c0_i32_0 = arith.constant 0 : i32
    %c0_i32_1 = arith.constant 0 : i32
    return %c0_i32, %c0_i32_0 : i32, i32
  }
  func.func @transform_3(%arg0: i32, %arg1: i32) -> (i32, i32) {
    %c0_i32 = arith.constant 0 : i32
    %c0_i32_0 = arith.constant 0 : i32
    %c0_i32_1 = arith.constant 0 : i32
    return %c0_i32, %c0_i32_0 : i32, i32
  }
  func.func @transform_4(%arg0: i32, %arg1: i32) -> (i32, i32) {
    %c0_i32 = arith.constant 0 : i32
    %c0_i32_0 = arith.constant 0 : i32
    %c0_i32_1 = arith.constant 0 : i32
    return %c0_i32, %c0_i32_0 : i32, i32
  }
  func.func @transform_5(%arg0: i32, %arg1: i32) -> (i32, i32, i32) {
    %c0_i32 = arith.constant 0 : i32
    %c0_i32_0 = arith.constant 0 : i32
    return %arg0, %c0_i32, %arg1 : i32, i32, i32
  }
}

</mosaic_0001>

<llo_original>
// kernel: tpu_custom_call.1
$region0: #{tpu_custom_call.1}
  #allocation0 [shape = 'u32[]', space=smem, size = 0x4, offset = 0x4, fixed_abs, tag = 'smem constant byte address 0x4 - core index']
  #allocation1 [shape = 'u32[144,128]{1,0:T(1,128)}', space=vmem, size = 0x12000, scoped, tag = 'internal scratch']
  %s0 = inlined_call_operand.hbm [shape: f32[2,8,256], index: 0, kind: input, shape index: {}]
  %s1 = inlined_call_operand.vmem [shape: f32[8,8], index: 1, kind: input, shape index: {}]
  %s2 = inlined_call_operand.vmem [shape: f32[8,1], index: 2, kind: input, shape index: {}]
  %s3 = inlined_call_operand.vmem [shape: f32[8,8], index: 3, kind: input, shape index: {}]
  %s4 = inlined_call_operand.vmem [shape: f32[8,1], index: 4, kind: input, shape index: {}]
  %s5 = inlined_call_operand.hbm [shape: f32[2,8,256], index: 5, kind: output, shape index: {}]
  %s6 = sld [smem:[#allocation0]]
  $region57: #{tpu_custom_call.1} parent=0
    _
  %s8 = ssub.s32 1, %s6
  %s9 = scalar_select 0, %s8, %s6
  $region1: #{tpu_custom_call.1} parent=0
    #allocation2 [shape = 'u8[16384]{0}', space=vmem, size = 0x4000, scoped, tag = 'input window, operand 0']
    #allocation3 [shape = 's32[2]{0}', space=sflag, size = 0x8, scoped, tag = 'scoped memory for tpu_custom_call.1']
    #allocation4 [shape = 's32[2]{0}', space=sflag, size = 0x8, scoped, tag = 'scoped memory for tpu_custom_call.1']
    #allocation5 [shape = 'u8[16384]{0}', space=vmem, size = 0x4000, scoped, tag = 'output window, operand 0']
    %10 = vsyncpa [#allocation3], 0
    %s11 = scalar_lea.sflag [#allocation3], 1
    %12 = vsyncpa %s11, 0
    %13 = vsyncpa [#allocation4], 0
    %s14 = scalar_lea.sflag [#allocation4], 1
    %15 = vsyncpa %s14, 0
    loop: start=0, step=1, limit=4
    $region2: #{tpu_custom_call.1} parent=1 // loop_pre_header
      _
    $region3: #{tpu_custom_call.1} parent=1 // loop_header
      %s17 = sphi 0, %s21
      %p18 = scmp.ge.s32.totalorder %s17, 4
      %s24 = sphi 0, %s36
      %s25 = sphi 0, %s32
      %s26 = sphi 0, %s24
      %s27 = sphi 0, %s25
      %s28 = sphi 0, %s26
      %s29 = sphi 0, %s27
      %s41 = sphi 0, %s43
      %s44 = sphi 0, %s41
      %s45 = sphi 0, %s44
      %s61 = sphi 0, %s45
      %s65 = sphi 0, %s65
      %s67 = sphi 0, %s65
      %s68 = sphi 0, %s67
      %s82 = sphi 0, %s68
      %s86 = sphi 0, %s86
      %s88 = sphi 0, %s86
      %s89 = sphi 0, %s88
      %s103 = sphi 0, %s89
      %s107 = sphi 0, %s107
      %s109 = sphi 0, %s107
      %s110 = sphi 0, %s109
      %s124 = sphi 0, %s110
      %s128 = sphi 0, %s128
      %s130 = sphi 0, %s128
      %s131 = sphi 0, %s130
      %s145 = sphi 0, %s131
      %s153 = sphi 0, %s155
      %s156 = sphi 0, %s153
      %s157 = sphi 0, %s156
      %s173 = sphi 0, %s157
    $region4: #{tpu_custom_call.1} parent=1 // loop_header_branch
      %20 = sbr.rel (%p18) target = $region8
    $region5: #{tpu_custom_call.1} parent=1 // loop_body
      %s22 = ssub.s32 %s17, 1
      %s23 = ssub.s32 %s17, 2
      %s30 = sadd.s32 1, %s25
      %p31 = scmp.ge.s32.totalorder %s30, 1
      %s32 = scalar_select %p31, 0, %s30
      %s33 = sadd.s32 1, %s24
      %s34 = scalar_select %p31, %s33, %s24
      %p35 = scmp.ge.s32.totalorder %s34, 2
      %s36 = scalar_select %p35, 0, %s34
      %s37 = ssub.s32 %s24, %s36
      %s38 = ssub.s32 %s25, %s32
      %s39 = sor.u32 %s37, %s38
      %p40 = scmp.eq.s32.totalorder %s39, 0
      %s42 = sadd.s32 %s41, 1
      %s43 = scalar_select %p40, %s41, %s42
      %p46 = pneg %p40
      %p47 = scmp.eq.s32.totalorder %s17, 1
      %p48 = por %p46, %p47
      %p49 = scmp.ne.s32.totalorder %s41, %s44
      %p50 = scmp.eq.s32.totalorder %s17, 0
      %p51 = por %p49, %p50
      %p52 = scmp.ne.s32.totalorder %s41, %s44
      %p53 = scmp.eq.s32.totalorder %s22, 1
      %p54 = por %p52, %p53
      %p55 = scmp.ne.s32.totalorder %s44, %s45
      %p56 = scmp.eq.s32.totalorder %s22, 0
      %p57 = por %p55, %p56
      %p58 = scmp.ne.s32.totalorder %s44, %s45
      %p59 = scmp.eq.s32.totalorder %s23, 1
      %p60 = por %p58, %p59
      %p62 = scmp.ne.s32.totalorder %s45, %s61
      %p63 = scmp.eq.s32.totalorder %s23, 0
      %p64 = por %p62, %p63
      %s66 = sadd.s32 %s65, 1
      %p69 = scmp.eq.s32.totalorder %s17, 1
      %p70 = scmp.ne.s32.totalorder %s65, %s67
      %p71 = scmp.eq.s32.totalorder %s17, 0
      %p72 = por %p70, %p71
      %p73 = scmp.ne.s32.totalorder %s65, %s67
      %p74 = scmp.eq.s32.totalorder %s22, 1
      %p75 = por %p73, %p74
      %p76 = scmp.ne.s32.totalorder %s67, %s68
      %p77 = scmp.eq.s32.totalorder %s22, 0
      %p78 = por %p76, %p77
      %p79 = scmp.ne.s32.totalorder %s67, %s68
      %p80 = scmp.eq.s32.totalorder %s23, 1
      %p81 = por %p79, %p80
      %p83 = scmp.ne.s32.totalorder %s68, %s82
      %p84 = scmp.eq.s32.totalorder %s23, 0
      %p85 = por %p83, %p84
      %s87 = sadd.s32 %s86, 1
      %p90 = scmp.eq.s32.totalorder %s17, 1
      %p91 = scmp.ne.s32.totalorder %s86, %s88
      %p92 = scmp.eq.s32.totalorder %s17, 0
      %p93 = por %p91, %p92
      %p94 = scmp.ne.s32.totalorder %s86, %s88
      %p95 = scmp.eq.s32.totalorder %s22, 1
      %p96 = por %p94, %p95
      %p97 = scmp.ne.s32.totalorder %s88, %s89
      %p98 = scmp.eq.s32.totalorder %s22, 0
      %p99 = por %p97, %p98
      %p100 = scmp.ne.s32.totalorder %s88, %s89
      %p101 = scmp.eq.s32.totalorder %s23, 1
      %p102 = por %p100, %p101
      %p104 = scmp.ne.s32.totalorder %s89, %s103
      %p105 = scmp.eq.s32.totalorder %s23, 0
      %p106 = por %p104, %p105
      %s108 = sadd.s32 %s107, 1
      %p111 = scmp.eq.s32.totalorder %s17, 1
      %p112 = scmp.ne.s32.totalorder %s107, %s109
      %p113 = scmp.eq.s32.totalorder %s17, 0
      %p114 = por %p112, %p113
      %p115 = scmp.ne.s32.totalorder %s107, %s109
      %p116 = scmp.eq.s32.totalorder %s22, 1
      %p117 = por %p115, %p116
      %p118 = scmp.ne.s32.totalorder %s109, %s110
      %p119 = scmp.eq.s32.totalorder %s22, 0
      %p120 = por %p118, %p119
      %p121 = scmp.ne.s32.totalorder %s109, %s110
      %p122 = scmp.eq.s32.totalorder %s23, 1
      %p123 = por %p121, %p122
      %p125 = scmp.ne.s32.totalorder %s110, %s124
      %p126 = scmp.eq.s32.totalorder %s23, 0
      %p127 = por %p125, %p126
      %s129 = sadd.s32 %s128, 1
      %p132 = scmp.eq.s32.totalorder %s17, 1
      %p133 = scmp.ne.s32.totalorder %s128, %s130
      %p134 = scmp.eq.s32.totalorder %s17, 0
      %p135 = por %p133, %p134
      %p136 = scmp.ne.s32.totalorder %s128, %s130
      %p137 = scmp.eq.s32.totalorder %s22, 1
      %p138 = por %p136, %p137
      %p139 = scmp.ne.s32.totalorder %s130, %s131
      %p140 = scmp.eq.s32.totalorder %s22, 0
      %p141 = por %p139, %p140
      %p142 = scmp.ne.s32.totalorder %s130, %s131
      %p143 = scmp.eq.s32.totalorder %s23, 1
      %p144 = por %p142, %p143
      %p146 = scmp.ne.s32.totalorder %s131, %s145
      %p147 = scmp.eq.s32.totalorder %s23, 0
      %p148 = por %p146, %p147
      %s149 = ssub.s32 %s24, %s36
      %s150 = ssub.s32 %s25, %s32
      %s151 = sor.u32 %s149, %s150
      %p152 = scmp.eq.s32.totalorder %s151, 0
      %s154 = sadd.s32 %s153, 1
      %s155 = scalar_select %p152, %s153, %s154
      %p158 = pneg %p152
      %p159 = scmp.eq.s32.totalorder %s17, 1
      %p160 = por %p158, %p159
      %p161 = scmp.ne.s32.totalorder %s153, %s156
      %p162 = scmp.eq.s32.totalorder %s17, 0
      %p163 = por %p161, %p162
      %p164 = scmp.ne.s32.totalorder %s153, %s156
      %p165 = scmp.eq.s32.totalorder %s22, 1
      %p166 = por %p164, %p165
      %p167 = scmp.ne.s32.totalorder %s156, %s157
      %p168 = scmp.eq.s32.totalorder %s22, 0
      %p169 = por %p167, %p168
      %p170 = scmp.ne.s32.totalorder %s156, %s157
      %p171 = scmp.eq.s32.totalorder %s23, 1
      %p172 = por %p170, %p171
      %p174 = scmp.ne.s32.totalorder %s157, %s173
      %p175 = scmp.eq.s32.totalorder %s23, 0
      %p176 = por %p174, %p175
      %p177 = scmp.le.s32.totalorder 1, %s17
      %p178 = scmp.lt.s32.totalorder %s17, 3
      %p179 = pnand %p177, %p178
      %p180 = pneg %p179
      // Predicated region
      $region9: #{tpu_custom_call.1} parent=5 // pred_check
        _
      $region10: #{tpu_custom_call.1} parent=5 // pred_check_branch
        %182 = sbr.rel (%p179) target = $region12
      $region11: #{tpu_custom_call.1} parent=5 // pred_region
        %s183 = ssub.s32 %s17, 1
        // Predicated region
        $region13: #{tpu_custom_call.1} parent=11 // pred_check
          %p184 = pneg %p78
        $region14: #{tpu_custom_call.1} parent=11 // pred_check_branch
          %186 = sbr.rel (%p184) target = $region16
        $region15: #{tpu_custom_call.1} parent=11 // pred_region
          _
        $region16: #{tpu_custom_call.1} parent=11 // pred_fallthru
          _
        // Predicated region
        $region17: #{tpu_custom_call.1} parent=11 // pred_check
          %p187 = pneg %p99
        $region18: #{tpu_custom_call.1} parent=11 // pred_check_branch
          %189 = sbr.rel (%p187) target = $region20
        $region19: #{tpu_custom_call.1} parent=11 // pred_region
          _
        $region20: #{tpu_custom_call.1} parent=11 // pred_fallthru
          _
        // Predicated region
        $region21: #{tpu_custom_call.1} parent=11 // pred_check
          %p190 = pneg %p120
        $region22: #{tpu_custom_call.1} parent=11 // pred_check_branch
          %192 = sbr.rel (%p190) target = $region24
        $region23: #{tpu_custom_call.1} parent=11 // pred_region
          _
        $region24: #{tpu_custom_call.1} parent=11 // pred_fallthru
          _
        // Predicated region
        $region25: #{tpu_custom_call.1} parent=11 // pred_check
          %p193 = pneg %p141
        $region26: #{tpu_custom_call.1} parent=11 // pred_check_branch
          %195 = sbr.rel (%p193) target = $region28
        $region27: #{tpu_custom_call.1} parent=11 // pred_region
          _
        $region28: #{tpu_custom_call.1} parent=11 // pred_fallthru
          _
      $region12: #{tpu_custom_call.1} parent=5 // pred_fallthru
        _
      %p196 = scmp.lt.s32.totalorder %s17, 2
      // Predicated region
      $region29: #{tpu_custom_call.1} parent=5 // pred_check
        %p197 = pneg %p196
      $region30: #{tpu_custom_call.1} parent=5 // pred_check_branch
        %199 = sbr.rel (%p197) target = $region32
      $region31: #{tpu_custom_call.1} parent=5 // pred_region
        // Predicated region
        $region33: #{tpu_custom_call.1} parent=31 // pred_check
          %p200 = pneg %p51
        $region34: #{tpu_custom_call.1} parent=31 // pred_check_branch
          %202 = sbr.rel (%p200) target = $region36
        $region35: #{tpu_custom_call.1} parent=31 // pred_region
          %s203 = sand.u32 %s41, 1
          %s204 = scalar_lea.sflag [#allocation3], %s203
          %s205 = sand.u32 %s41, 1
          %s206 = smul.addr %s205, 16
          %s207 = scalar_lea.vmem [#allocation2], %s206
          %s208 = smul.u32 2, %s25
          %s210 = ssub.s32 256, 256
          %211 = vsyncadd %s204, %s210
          %s212 = smul.addr %s24, 2
          %s213 = sadd.s32 %s208, %s212
          %s214 = smul.addr %s213, 128
          %s215 = scalar_lea.hbm %s0, %s214
          %s217 = sshll.u32 %s207, 4
          %s218 = int_to_ptr.vmem [resolvable:$true] %s217
          %220 = dma.hbm_to_vmem [thread:$0]  %s215, 256, %s218, %s204
        $region36: #{tpu_custom_call.1} parent=31 // pred_fallthru
          _
      $region32: #{tpu_custom_call.1} parent=5 // pred_fallthru
        _
      %p221 = scmp.le.s32.totalorder 1, %s17
      %p222 = scmp.lt.s32.totalorder %s17, 3
      %p223 = pnand %p221, %p222
      %p224 = pneg %p223
      // Predicated region
      $region37: #{tpu_custom_call.1} parent=5 // pred_check
        _
      $region38: #{tpu_custom_call.1} parent=5 // pred_check_branch
        %226 = sbr.rel (%p223) target = $region40
      $region39: #{tpu_custom_call.1} parent=5 // pred_region
        %s227 = ssub.s32 %s17, 1
        %s228 = sand.u32 %s44, 1
        %s229 = scalar_lea.sflag [#allocation3], %s228
        %s230 = sand.u32 %s44, 1
        %s231 = smul.addr %s230, 16
        %s232 = scalar_lea.vmem [#allocation2], %s231
        // Predicated region
        $region41: #{tpu_custom_call.1} parent=39 // pred_check
          %p233 = pneg %p57
        $region42: #{tpu_custom_call.1} parent=39 // pred_check_branch
          %235 = sbr.rel (%p233) target = $region44
        $region43: #{tpu_custom_call.1} parent=39 // pred_region
          %236 = dma.done %s229, 256
        $region44: #{tpu_custom_call.1} parent=39 // pred_fallthru
          _
        %s237 = sand.u32 %s44, 1
        %s238 = scalar_lea.sflag [#allocation3], %s237
        %s239 = sand.u32 %s44, 1
        %s240 = smul.addr %s239, 16
        %s241 = scalar_lea.vmem [#allocation2], %s240
        %p242 = pneg %p57
        %p243 = pneg %p54
        %p244 = pneg %p78
        %p245 = pneg %p75
        %p246 = pneg %p99
        %p247 = pneg %p96
        %p248 = pneg %p120
        %p249 = pneg %p117
        %p250 = pneg %p141
        %p251 = pneg %p138
        %p252 = pneg %p169
        %p253 = pneg %p166
        %s254 = sand.u32 %s156, 1
        %s255 = scalar_lea.sflag [#allocation4], %s254
        %s256 = sand.u32 %s156, 1
        %s257 = smul.addr %s256, 16
        %s258 = scalar_lea.vmem [#allocation5], %s257
        %s259 = smul.u32 2, %s27
        %s260 = smul.u32 2, %s27
        %v261 = vld [vmem:[%s232] sm:$0xff]
        %v262 = vld [vmem:[%s232 + $0x8] sm:$0xff]
        %v263 = vld [vmem:[%s1] sm:$0xff]
        %v264 = vld [vmem:[%s2] sm:$0xff]
        %266 = vset.pattern.permute.xlu0 0
        %267 = vperm.xlu0 %266, %v264
        %v268 = vpop.permute.xlu0 %267
        %vm270 = vcmask 64512
        %v272 = vsel %vm270, %v263, 0
        %274 = vmatprep.subr.mxu0 %v262
        %275 = vmatpush1.msra.mxu0 %v261
        %276 = vmatprep.subr.mxu0 0.0
        %277 = vmatpush1.msra.mxu0 0.0
        %278 = vmatprep.subr.mxu0 0.0
        %279 = vmatpush1.msra.mxu0 0.0
        %280 = vmatprep.subr.mxu0 0.0
        %281 = vmatpush1.msra.mxu0 0.0
        %282 = vmatprep.subr.mxu0 0.0
        %283 = vmatpush1.msra.mxu0 0.0
        %284 = vmatprep.subr.mxu0 0.0
        %285 = vmatpush1.msra.mxu0 0.0
        %286 = vmatprep.subr.mxu0 0.0
        %287 = vmatpush1.msra.mxu0 0.0
        %288 = vmatprep.subr.mxu0 0.0
        %289 = vmatpush1.msra.mxu0 0.0
        %290 = vmatprep.subr.mxu0 0.0
        %291 = vmatpush1.msra.mxu0 0.0
        %292 = vmatprep.subr.mxu0 0.0
        %293 = vmatpush1.msra.mxu0 0.0
        %294 = vmatprep.subr.mxu0 0.0
        %295 = vmatpush1.msra.mxu0 0.0
        %296 = vmatprep.subr.mxu0 0.0
        %297 = vmatpush1.msra.mxu0 0.0
        %298 = vmatprep.subr.mxu0 0.0
        %299 = vmatpush1.msra.mxu0 0.0
        %300 = vmatprep.subr.mxu0 0.0
        %301 = vmatpush1.msra.mxu0 0.0
        %302 = vmatprep.subr.mxu0 0.0
        %303 = vmatpush1.msra.mxu0 0.0
        %304 = vmatprep.subr.mxu0 0.0
        %305 = vmatpush1.msra.mxu0 0.0
        %306 = vmatprep.subr.mxu0 0.0
        %307 = vmatpush1.msra.mxu0 0.0
        %308 = vmatprep.subr.mxu0 0.0
        %309 = vmatpush1.msra.mxu0 0.0
        %310 = vmatprep.subr.mxu0 0.0
        %311 = vmatpush1.msra.mxu0 0.0
        %312 = vmatprep.subr.mxu0 0.0
        %313 = vmatpush1.msra.mxu0 0.0
        %314 = vmatprep.subr.mxu0 0.0
        %315 = vmatpush1.msra.mxu0 0.0
        %316 = vmatprep.subr.mxu0 0.0
        %317 = vmatpush1.msra.mxu0 0.0
        %318 = vmatprep.subr.mxu0 0.0
        %319 = vmatpush1.msra.mxu0 0.0
        %320 = vmatprep.subr.mxu0 0.0
        %321 = vmatpush1.msra.mxu0 0.0
        %322 = vmatprep.subr.mxu0 0.0
        %323 = vmatpush1.msra.mxu0 0.0
        %324 = vmatprep.subr.mxu0 0.0
        %325 = vmatpush1.msra.mxu0 0.0
        %326 = vmatprep.subr.mxu0 0.0
        %327 = vmatpush1.msra.mxu0 0.0
        %328 = vmatprep.subr.mxu0 0.0
        %329 = vmatpush1.msra.mxu0 0.0
        %330 = vmatprep.subr.mxu0 0.0
        %331 = vmatpush1.msra.mxu0 0.0
        %332 = vmatprep.subr.mxu0 0.0
        %333 = vmatpush1.msra.mxu0 0.0
        %334 = vmatprep.subr.mxu0 0.0
        %335 = vmatpush1.msra.mxu0 0.0
        %336 = vmatprep.subr.mxu0 0.0
        %337 = vmatpush1.msra.mxu0 0.0
        %338 = vmatprep.mubr.f32.mxu0 0.0
        %339 = vmatmul.mubr.f32.gmra.mrb[0].mxu0 %v272
        %v340 = vpop.f32.mrb[0].mxu0
        %v341 = vadd.f32 %v268, %v340
        %v342 = vpop.f32.mrb[0].mxu0
        %v343 = vadd.f32 %v268, %v342
        %344 = vdwg.mxu0
        %v345 = vmax.f32 %v341, 0.0
        %v346 = vmax.f32 %v343, 0.0
        %v347 = vld [vmem:[%s3] sm:$0xff]
        %v348 = vld [vmem:[%s4] sm:$0xff]
        %350 = vset.pattern.permute.xlu0 0
        %351 = vperm.xlu0 %350, %v348
        %v352 = vpop.permute.xlu0 %351
        %v355 = vsel %vm270, %v347, 0
        %357 = vmatprep.subr.mxu0 %v346
        %358 = vmatpush1.msra.mxu0 %v345
        %359 = vmatprep.subr.mxu0 0.0
        %360 = vmatpush1.msra.mxu0 0.0
        %361 = vmatprep.subr.mxu0 0.0
        %362 = vmatpush1.msra.mxu0 0.0
        %363 = vmatprep.subr.mxu0 0.0
        %364 = vmatpush1.msra.mxu0 0.0
        %365 = vmatprep.subr.mxu0 0.0
        %366 = vmatpush1.msra.mxu0 0.0
        %367 = vmatprep.subr.mxu0 0.0
        %368 = vmatpush1.msra.mxu0 0.0
        %369 = vmatprep.subr.mxu0 0.0
        %370 = vmatpush1.msra.mxu0 0.0
        %371 = vmatprep.subr.mxu0 0.0
        %372 = vmatpush1.msra.mxu0 0.0
        %373 = vmatprep.subr.mxu0 0.0
        %374 = vmatpush1.msra.mxu0 0.0
        %375 = vmatprep.subr.mxu0 0.0
        %376 = vmatpush1.msra.mxu0 0.0
        %377 = vmatprep.subr.mxu0 0.0
        %378 = vmatpush1.msra.mxu0 0.0
        %379 = vmatprep.subr.mxu0 0.0
        %380 = vmatpush1.msra.mxu0 0.0
        %381 = vmatprep.subr.mxu0 0.0
        %382 = vmatpush1.msra.mxu0 0.0
        %383 = vmatprep.subr.mxu0 0.0
        %384 = vmatpush1.msra.mxu0 0.0
        %385 = vmatprep.subr.mxu0 0.0
        %386 = vmatpush1.msra.mxu0 0.0
        %387 = vmatprep.subr.mxu0 0.0
        %388 = vmatpush1.msra.mxu0 0.0
        %389 = vmatprep.subr.mxu0 0.0
        %390 = vmatpush1.msra.mxu0 0.0
        %391 = vmatprep.subr.mxu0 0.0
        %392 = vmatpush1.msra.mxu0 0.0
        %393 = vmatprep.subr.mxu0 0.0
        %394 = vmatpush1.msra.mxu0 0.0
        %395 = vmatprep.subr.mxu0 0.0
        %396 = vmatpush1.msra.mxu0 0.0
        %397 = vmatprep.subr.mxu0 0.0
        %398 = vmatpush1.msra.mxu0 0.0
        %399 = vmatprep.subr.mxu0 0.0
        %400 = vmatpush1.msra.mxu0 0.0
        %401 = vmatprep.subr.mxu0 0.0
        %402 = vmatpush1.msra.mxu0 0.0
        %403 = vmatprep.subr.mxu0 0.0
        %404 = vmatpush1.msra.mxu0 0.0
        %405 = vmatprep.subr.mxu0 0.0
        %406 = vmatpush1.msra.mxu0 0.0
        %407 = vmatprep.subr.mxu0 0.0
        %408 = vmatpush1.msra.mxu0 0.0
        %409 = vmatprep.subr.mxu0 0.0
        %410 = vmatpush1.msra.mxu0 0.0
        %411 = vmatprep.subr.mxu0 0.0
        %412 = vmatpush1.msra.mxu0 0.0
        %413 = vmatprep.subr.mxu0 0.0
        %414 = vmatpush1.msra.mxu0 0.0
        %415 = vmatprep.subr.mxu0 0.0
        %416 = vmatpush1.msra.mxu0 0.0
        %417 = vmatprep.subr.mxu0 0.0
        %418 = vmatpush1.msra.mxu0 0.0
        %419 = vmatprep.subr.mxu0 0.0
        %420 = vmatpush1.msra.mxu0 0.0
        %421 = vmatprep.mubr.f32.mxu0 0.0
        %422 = vmatmul.mubr.f32.gmra.mrb[0].mxu0 %v355
        %v423 = vpop.f32.mrb[0].mxu0
        %v424 = vadd.f32 %v352, %v423
        %v425 = vpop.f32.mrb[0].mxu0
        %v426 = vadd.f32 %v352, %v425
        %427 = vdwg.mxu0
        %v428 = vadd.f32 %v424, %v261
        %v429 = vadd.f32 %v426, %v262
        %430 = vst [vmem:[%s258] sm:$0xff] %v428
        %431 = vst [vmem:[%s258 + $0x8] sm:$0xff] %v429
        %s432 = sand.u32 %s156, 1
        %s433 = scalar_lea.sflag [#allocation4], %s432
        %s434 = sand.u32 %s156, 1
        %s435 = smul.addr %s434, 16
        %s436 = scalar_lea.vmem [#allocation5], %s435
        // Predicated region
        $region45: #{tpu_custom_call.1} parent=39 // pred_check
          %p437 = pneg %p166
        $region46: #{tpu_custom_call.1} parent=39 // pred_check_branch
          %439 = sbr.rel (%p437) target = $region48
        $region47: #{tpu_custom_call.1} parent=39 // pred_region
          %s440 = smul.u32 2, %s27
          %s442 = ssub.s32 256, 256
          %443 = vsyncadd %s433, %s442
          %s444 = smul.addr %s26, 2
          %s445 = sadd.s32 %s440, %s444
          %s446 = smul.addr %s445, 128
          %s447 = scalar_lea.hbm %s5, %s446
          %s449 = sshll.u32 %s436, 4
          %s450 = int_to_ptr.vmem [resolvable:$true] %s449
          %452 = dma.vmem_to_hbm [thread:$0]  %s450, 256, %s447, %s433
        $region48: #{tpu_custom_call.1} parent=39 // pred_fallthru
          _
      $region40: #{tpu_custom_call.1} parent=5 // pred_fallthru
        _
      %p453 = scmp.le.s32.totalorder 2, %s17
      // Predicated region
      $region49: #{tpu_custom_call.1} parent=5 // pred_check
        %p454 = pneg %p453
      $region50: #{tpu_custom_call.1} parent=5 // pred_check_branch
        %456 = sbr.rel (%p454) target = $region52
      $region51: #{tpu_custom_call.1} parent=5 // pred_region
        %s457 = ssub.s32 %s17, 2
        // Predicated region
        $region53: #{tpu_custom_call.1} parent=51 // pred_check
          %p458 = pneg %p172
        $region54: #{tpu_custom_call.1} parent=51 // pred_check_branch
          %460 = sbr.rel (%p458) target = $region56
        $region55: #{tpu_custom_call.1} parent=51 // pred_region
          %s461 = sand.u32 %s157, 1
          %s462 = scalar_lea.sflag [#allocation4], %s461
          %s463 = sand.u32 %s157, 1
          %s464 = smul.addr %s463, 16
          %s465 = scalar_lea.vmem [#allocation5], %s464
          %466 = dma.done %s462, 256
        $region56: #{tpu_custom_call.1} parent=51 // pred_fallthru
          _
      $region52: #{tpu_custom_call.1} parent=5 // pred_fallthru
        _
    $region6: #{tpu_custom_call.1} parent=1 // loop_footer
      %s21 = sadd.s32 1, %s17
    $region7: #{tpu_custom_call.1} parent=1 // loop_footer_branch
      %16 = sbr.rel target = $region3
    $region8: #{tpu_custom_call.1} parent=1 // loop_exit
      _
    %467 = vsyncpa [#allocation3], 1
    %s468 = scalar_lea.sflag [#allocation3], 1
    %469 = vsyncpa %s468, 1
    %470 = vsyncpa [#allocation4], 1
    %s471 = scalar_lea.sflag [#allocation4], 1
    %472 = vsyncpa %s471, 1

// kernel: tpu_custom_call.1
$region0: #{tpu_custom_call.1}
  #allocation0 [shape = 'u32[]', space=smem, size = 0x4, offset = 0x4, fixed_abs, tag = 'smem constant byte address 0x4 - core index']
  #allocation1 [shape = 'u32[144,128]{1,0:T(1,128)}', space=vmem, size = 0x12000, scoped, tag = 'internal scratch']
  %s0 = inlined_call_operand.hbm [shape: f32[2,8,256], index: 0, kind: input, shape index: {}]
  %s1 = inlined_call_operand.vmem [shape: f32[8,8], index: 1, kind: input, shape index: {}]
  %s2 = inlined_call_operand.vmem [shape: f32[8,1], index: 2, kind: input, shape index: {}]
  %s3 = inlined_call_operand.vmem [shape: f32[8,8], index: 3, kind: input, shape index: {}]
  %s4 = inlined_call_operand.vmem [shape: f32[8,1], index: 4, kind: input, shape index: {}]
  %s5 = inlined_call_operand.hbm [shape: f32[2,8,256], index: 5, kind: output, shape index: {}]
  %s6 = sld [smem:[#allocation0]]
  $region57: #{tpu_custom_call.1} parent=0
    _
  %s8 = ssub.s32 1, %s6
  %s9 = scalar_select 0, %s8, %s6
  $region1: #{tpu_custom_call.1} parent=0
    #allocation2 [shape = 'u8[16384]{0}', space=vmem, size = 0x4000, scoped, tag = 'input window, operand 0']
    #allocation3 [shape = 's32[2]{0}', space=sflag, size = 0x8, scoped, tag = 'scoped memory for tpu_custom_call.1']
    #allocation4 [shape = 's32[2]{0}', space=sflag, size = 0x8, scoped, tag = 'scoped memory for tpu_custom_call.1']
    #allocation5 [shape = 'u8[16384]{0}', space=vmem, size = 0x4000, scoped, tag = 'output window, operand 0']
    %10 = vsyncpa [#allocation3], 0
    %s11 = scalar_lea.sflag [#allocation3], 1
    %12 = vsyncpa %s11, 0
    %13 = vsyncpa [#allocation4], 0
    %s14 = scalar_lea.sflag [#allocation4], 1
    %15 = vsyncpa %s14, 0
    loop: start=0, step=1, limit=4
    $region2: #{tpu_custom_call.1} parent=1 // loop_pre_header
      _
    $region3: #{tpu_custom_call.1} parent=1 // loop_header
      %s17 = sphi 0, %s21
      %p18 = scmp.ge.s32.totalorder %s17, 4
      %s24 = sphi 0, %s36
      %s25 = sphi 0, %s32
      %s26 = sphi 0, %s24
      %s27 = sphi 0, %s25
      %s28 = sphi 0, %s26
      %s29 = sphi 0, %s27
      %s41 = sphi 0, %s43
      %s44 = sphi 0, %s41
      %s45 = sphi 0, %s44
      %s61 = sphi 0, %s45
      %s65 = sphi 0, %s65
      %s67 = sphi 0, %s65
      %s68 = sphi 0, %s67
      %s82 = sphi 0, %s68
      %s86 = sphi 0, %s86
      %s88 = sphi 0, %s86
      %s89 = sphi 0, %s88
      %s103 = sphi 0, %s89
      %s107 = sphi 0, %s107
      %s109 = sphi 0, %s107
      %s110 = sphi 0, %s109
      %s124 = sphi 0, %s110
      %s128 = sphi 0, %s128
      %s130 = sphi 0, %s128
      %s131 = sphi 0, %s130
      %s145 = sphi 0, %s131
      %s153 = sphi 0, %s155
      %s156 = sphi 0, %s153
      %s157 = sphi 0, %s156
      %s173 = sphi 0, %s157
    $region4: #{tpu_custom_call.1} parent=1 // loop_header_branch
      %20 = sbr.rel (%p18) target = $region8
    $region5: #{tpu_custom_call.1} parent=1 // loop_body
      %s22 = ssub.s32 %s17, 1
      %s23 = ssub.s32 %s17, 2
      %s30 = sadd.s32 1, %s25
      %p31 = scmp.ge.s32.totalorder %s30, 1
      %s32 = scalar_select %p31, 0, %s30
      %s33 = sadd.s32 1, %s24
      %s34 = scalar_select %p31, %s33, %s24
      %p35 = scmp.ge.s32.totalorder %s34, 2
      %s36 = scalar_select %p35, 0, %s34
      %s37 = ssub.s32 %s24, %s36
      %s38 = ssub.s32 %s25, %s32
      %s39 = sor.u32 %s37, %s38
      %p40 = scmp.eq.s32.totalorder %s39, 0
      %s42 = sadd.s32 %s41, 1
      %s43 = scalar_select %p40, %s41, %s42
      %p46 = pneg %p40
      %p47 = scmp.eq.s32.totalorder %s17, 1
      %p48 = por %p46, %p47
      %p49 = scmp.ne.s32.totalorder %s41, %s44
      %p50 = scmp.eq.s32.totalorder %s17, 0
      %p51 = por %p49, %p50
      %p52 = scmp.ne.s32.totalorder %s41, %s44
      %p53 = scmp.eq.s32.totalorder %s22, 1
      %p54 = por %p52, %p53
      %p55 = scmp.ne.s32.totalorder %s44, %s45
      %p56 = scmp.eq.s32.totalorder %s22, 0
      %p57 = por %p55, %p56
      %p58 = scmp.ne.s32.totalorder %s44, %s45
      %p59 = scmp.eq.s32.totalorder %s23, 1
      %p60 = por %p58, %p59
      %p62 = scmp.ne.s32.totalorder %s45, %s61
      %p63 = scmp.eq.s32.totalorder %s23, 0
      %p64 = por %p62, %p63
      %s66 = sadd.s32 %s65, 1
      %p69 = scmp.eq.s32.totalorder %s17, 1
      %p70 = scmp.ne.s32.totalorder %s65, %s67
      %p71 = scmp.eq.s32.totalorder %s17, 0
      %p72 = por %p70, %p71
      %p73 = scmp.ne.s32.totalorder %s65, %s67
      %p74 = scmp.eq.s32.totalorder %s22, 1
      %p75 = por %p73, %p74
      %p76 = scmp.ne.s32.totalorder %s67, %s68
      %p77 = scmp.eq.s32.totalorder %s22, 0
      %p78 = por %p76, %p77
      %p79 = scmp.ne.s32.totalorder %s67, %s68
      %p80 = scmp.eq.s32.totalorder %s23, 1
      %p81 = por %p79, %p80
      %p83 = scmp.ne.s32.totalorder %s68, %s82
      %p84 = scmp.eq.s32.totalorder %s23, 0
      %p85 = por %p83, %p84
      %s87 = sadd.s32 %s86, 1
      %p90 = scmp.eq.s32.totalorder %s17, 1
      %p91 = scmp.ne.s32.totalorder %s86, %s88
      %p92 = scmp.eq.s32.totalorder %s17, 0
      %p93 = por %p91, %p92
      %p94 = scmp.ne.s32.totalorder %s86, %s88
      %p95 = scmp.eq.s32.totalorder %s22, 1
      %p96 = por %p94, %p95
      %p97 = scmp.ne.s32.totalorder %s88, %s89
      %p98 = scmp.eq.s32.totalorder %s22, 0
      %p99 = por %p97, %p98
      %p100 = scmp.ne.s32.totalorder %s88, %s89
      %p101 = scmp.eq.s32.totalorder %s23, 1
      %p102 = por %p100, %p101
      %p104 = scmp.ne.s32.totalorder %s89, %s103
      %p105 = scmp.eq.s32.totalorder %s23, 0
      %p106 = por %p104, %p105
      %s108 = sadd.s32 %s107, 1
      %p111 = scmp.eq.s32.totalorder %s17, 1
      %p112 = scmp.ne.s32.totalorder %s107, %s109
      %p113 = scmp.eq.s32.totalorder %s17, 0
      %p114 = por %p112, %p113
      %p115 = scmp.ne.s32.totalorder %s107, %s109
      %p116 = scmp.eq.s32.totalorder %s22, 1
      %p117 = por %p115, %p116
      %p118 = scmp.ne.s32.totalorder %s109, %s110
      %p119 = scmp.eq.s32.totalorder %s22, 0
      %p120 = por %p118, %p119
      %p121 = scmp.ne.s32.totalorder %s109, %s110
      %p122 = scmp.eq.s32.totalorder %s23, 1
      %p123 = por %p121, %p122
      %p125 = scmp.ne.s32.totalorder %s110, %s124
      %p126 = scmp.eq.s32.totalorder %s23, 0
      %p127 = por %p125, %p126
      %s129 = sadd.s32 %s128, 1
      %p132 = scmp.eq.s32.totalorder %s17, 1
      %p133 = scmp.ne.s32.totalorder %s128, %s130
      %p134 = scmp.eq.s32.totalorder %s17, 0
      %p135 = por %p133, %p134
      %p136 = scmp.ne.s32.totalorder %s128, %s130
      %p137 = scmp.eq.s32.totalorder %s22, 1
      %p138 = por %p136, %p137
      %p139 = scmp.ne.s32.totalorder %s130, %s131
      %p140 = scmp.eq.s32.totalorder %s22, 0
      %p141 = por %p139, %p140
      %p142 = scmp.ne.s32.totalorder %s130, %s131
      %p143 = scmp.eq.s32.totalorder %s23, 1
      %p144 = por %p142, %p143
      %p146 = scmp.ne.s32.totalorder %s131, %s145
      %p147 = scmp.eq.s32.totalorder %s23, 0
      %p148 = por %p146, %p147
      %s149 = ssub.s32 %s24, %s36
      %s150 = ssub.s32 %s25, %s32
      %s151 = sor.u32 %s149, %s150
      %p152 = scmp.eq.s32.totalorder %s151, 0
      %s154 = sadd.s32 %s153, 1
      %s155 = scalar_select %p152, %s153, %s154
      %p158 = pneg %p152
      %p159 = scmp.eq.s32.totalorder %s17, 1
      %p160 = por %p158, %p159
      %p161 = scmp.ne.s32.totalorder %s153, %s156
      %p162 = scmp.eq.s32.totalorder %s17, 0
      %p163 = por %p161, %p162
      %p164 = scmp.ne.s32.totalorder %s153, %s156
      %p165 = scmp.eq.s32.totalorder %s22, 1
      %p166 = por %p164, %p165
      %p167 = scmp.ne.s32.totalorder %s156, %s157
      %p168 = scmp.eq.s32.totalorder %s22, 0
      %p169 = por %p167, %p168
      %p170 = scmp.ne.s32.totalorder %s156, %s157
      %p171 = scmp.eq.s32.totalorder %s23, 1
      %p172 = por %p170, %p171
      %p174 = scmp.ne.s32.totalorder %s157, %s173
      %p175 = scmp.eq.s32.totalorder %s23, 0
      %p176 = por %p174, %p175
      %p177 = scmp.le.s32.totalorder 1, %s17
      %p178 = scmp.lt.s32.totalorder %s17, 3
      %p179 = pnand %p177, %p178
      %p180 = pneg %p179
      // Predicated region
      $region9: #{tpu_custom_call.1} parent=5 // pred_check
        _
      $region10: #{tpu_custom_call.1} parent=5 // pred_check_branch
        %182 = sbr.rel (%p179) target = $region12
      $region11: #{tpu_custom_call.1} parent=5 // pred_region
        %s183 = ssub.s32 %s17, 1
        // Predicated region
        $region13: #{tpu_custom_call.1} parent=11 // pred_check
          %p184 = pneg %p78
        $region14: #{tpu_custom_call.1} parent=11 // pred_check_branch
          %186 = sbr.rel (%p184) target = $region16
        $region15: #{tpu_custom_call.1} parent=11 // pred_region
          _
        $region16: #{tpu_custom_call.1} parent=11 // pred_fallthru
          _
        // Predicated region
        $region17: #{tpu_custom_call.1} parent=11 // pred_check
          %p187 = pneg %p99
        $region18: #{tpu_custom_call.1} parent=11 // pred_check_branch
          %189 = sbr.rel (%p187) target = $region20
        $region19: #{tpu_custom_call.1} parent=11 // pred_region
          _
        $region20: #{tpu_custom_call.1} parent=11 // pred_fallthru
          _
        // Predicated region
        $region21: #{tpu_custom_call.1} parent=11 // pred_check
          %p190 = pneg %p120
        $region22: #{tpu_custom_call.1} parent=11 // pred_check_branch
          %192 = sbr.rel (%p190) target = $region24
        $region23: #{tpu_custom_call.1} parent=11 // pred_region
          _
        $region24: #{tpu_custom_call.1} parent=11 // pred_fallthru
          _
        // Predicated region
        $region25: #{tpu_custom_call.1} parent=11 // pred_check
          %p193 = pneg %p141
        $region26: #{tpu_custom_call.1} parent=11 // pred_check_branch
          %195 = sbr.rel (%p193) target = $region28
        $region27: #{tpu_custom_call.1} parent=11 // pred_region
          _
        $region28: #{tpu_custom_call.1} parent=11 // pred_fallthru
          _
      $region12: #{tpu_custom_call.1} parent=5 // pred_fallthru
        _
      %p196 = scmp.lt.s32.totalorder %s17, 2
      // Predicated region
      $region29: #{tpu_custom_call.1} parent=5 // pred_check
        %p197 = pneg %p196
      $region30: #{tpu_custom_call.1} parent=5 // pred_check_branch
        %199 = sbr.rel (%p197) target = $region32
      $region31: #{tpu_custom_call.1} parent=5 // pred_region
        // Predicated region
        $region33: #{tpu_custom_call.1} parent=31 // pred_check
          %p200 = pneg %p51
        $region34: #{tpu_custom_call.1} parent=31 // pred_check_branch
          %202 = sbr.rel (%p200) target = $region36
        $region35: #{tpu_custom_call.1} parent=31 // pred_region
          %s203 = sand.u32 %s41, 1
          %s204 = scalar_lea.sflag [#allocation3], %s203
          %s205 = sand.u32 %s41, 1
          %s206 = smul.addr %s205, 16
          %s207 = scalar_lea.vmem [#allocation2], %s206
          %s208 = smul.u32 2, %s25
          %s210 = ssub.s32 256, 256
          %211 = vsyncadd %s204, %s210
          %s212 = smul.addr %s24, 2
          %s213 = sadd.s32 %s208, %s212
          %s214 = smul.addr %s213, 128
          %s215 = scalar_lea.hbm %s0, %s214
          %s217 = sshll.u32 %s207, 4
          %s218 = int_to_ptr.vmem [resolvable:$true] %s217
          %220 = dma.hbm_to_vmem [thread:$0]  %s215, 256, %s218, %s204
        $region36: #{tpu_custom_call.1} parent=31 // pred_fallthru
          _
      $region32: #{tpu_custom_call.1} parent=5 // pred_fallthru
        _
      %p221 = scmp.le.s32.totalorder 1, %s17
      %p222 = scmp.lt.s32.totalorder %s17, 3
      %p223 = pnand %p221, %p222
      %p224 = pneg %p223
      // Predicated region
      $region37: #{tpu_custom_call.1} parent=5 // pred_check
        _
      $region38: #{tpu_custom_call.1} parent=5 // pred_check_branch
        %226 = sbr.rel (%p223) target = $region40
      $region39: #{tpu_custom_call.1} parent=5 // pred_region
        %s227 = ssub.s32 %s17, 1
        %s228 = sand.u32 %s44, 1
        %s229 = scalar_lea.sflag [#allocation3], %s228
        %s230 = sand.u32 %s44, 1
        %s231 = smul.addr %s230, 16
        %s232 = scalar_lea.vmem [#allocation2], %s231
        // Predicated region
        $region41: #{tpu_custom_call.1} parent=39 // pred_check
          %p233 = pneg %p57
        $region42: #{tpu_custom_call.1} parent=39 // pred_check_branch
          %235 = sbr.rel (%p233) target = $region44
        $region43: #{tpu_custom_call.1} parent=39 // pred_region
          %236 = dma.done %s229, 256
        $region44: #{tpu_custom_call.1} parent=39 // pred_fallthru
          _
        %s237 = sand.u32 %s44, 1
        %s238 = scalar_lea.sflag [#allocation3], %s237
        %s239 = sand.u32 %s44, 1
        %s240 = smul.addr %s239, 16
        %s241 = scalar_lea.vmem [#allocation2], %s240
        %p242 = pneg %p57
        %p243 = pneg %p54
        %p244 = pneg %p78
        %p245 = pneg %p75
        %p246 = pneg %p99
        %p247 = pneg %p96
        %p248 = pneg %p120
        %p249 = pneg %p117
        %p250 = pneg %p141
        %p251 = pneg %p138
        %p252 = pneg %p169
        %p253 = pneg %p166
        %s254 = sand.u32 %s156, 1
        %s255 = scalar_lea.sflag [#allocation4], %s254
        %s256 = sand.u32 %s156, 1
        %s257 = smul.addr %s256, 16
        %s258 = scalar_lea.vmem [#allocation5], %s257
        %s259 = smul.u32 2, %s27
        %s260 = smul.u32 2, %s27
        %v261 = vld [vmem:[%s232] sm:$0xff]
        %v262 = vld [vmem:[%s232 + $0x8] sm:$0xff]
        %v263 = vld [vmem:[%s1] sm:$0xff]
        %v264 = vld [vmem:[%s2] sm:$0xff]
        %266 = vset.pattern.permute.xlu0 0
        %267 = vperm.xlu0 %266, %v264
        %v268 = vpop.permute.xlu0 %267
        %vm270 = vcmask 64512
        %v272 = vsel %vm270, %v263, 0
        %274 = vmatprep.subr.mxu0 %v262
        %275 = vmatpush1.msra.mxu0 %v261
        %276 = vmatprep.subr.mxu0 0.0
        %277 = vmatpush1.msra.mxu0 0.0
        %278 = vmatprep.subr.mxu0 0.0
        %279 = vmatpush1.msra.mxu0 0.0
        %280 = vmatprep.subr.mxu0 0.0
        %281 = vmatpush1.msra.mxu0 0.0
        %282 = vmatprep.subr.mxu0 0.0
        %283 = vmatpush1.msra.mxu0 0.0
        %284 = vmatprep.subr.mxu0 0.0
        %285 = vmatpush1.msra.mxu0 0.0
        %286 = vmatprep.subr.mxu0 0.0
        %287 = vmatpush1.msra.mxu0 0.0
        %288 = vmatprep.subr.mxu0 0.0
        %289 = vmatpush1.msra.mxu0 0.0
        %290 = vmatprep.subr.mxu0 0.0
        %291 = vmatpush1.msra.mxu0 0.0
        %292 = vmatprep.subr.mxu0 0.0
        %293 = vmatpush1.msra.mxu0 0.0
        %294 = vmatprep.subr.mxu0 0.0
        %295 = vmatpush1.msra.mxu0 0.0
        %296 = vmatprep.subr.mxu0 0.0
        %297 = vmatpush1.msra.mxu0 0.0
        %298 = vmatprep.subr.mxu0 0.0
        %299 = vmatpush1.msra.mxu0 0.0
        %300 = vmatprep.subr.mxu0 0.0
        %301 = vmatpush1.msra.mxu0 0.0
        %302 = vmatprep.subr.mxu0 0.0
        %303 = vmatpush1.msra.mxu0 0.0
        %304 = vmatprep.subr.mxu0 0.0
        %305 = vmatpush1.msra.mxu0 0.0
        %306 = vmatprep.subr.mxu0 0.0
        %307 = vmatpush1.msra.mxu0 0.0
        %308 = vmatprep.subr.mxu0 0.0
        %309 = vmatpush1.msra.mxu0 0.0
        %310 = vmatprep.subr.mxu0 0.0
        %311 = vmatpush1.msra.mxu0 0.0
        %312 = vmatprep.subr.mxu0 0.0
        %313 = vmatpush1.msra.mxu0 0.0
        %314 = vmatprep.subr.mxu0 0.0
        %315 = vmatpush1.msra.mxu0 0.0
        %316 = vmatprep.subr.mxu0 0.0
        %317 = vmatpush1.msra.mxu0 0.0
        %318 = vmatprep.subr.mxu0 0.0
        %319 = vmatpush1.msra.mxu0 0.0
        %320 = vmatprep.subr.mxu0 0.0
        %321 = vmatpush1.msra.mxu0 0.0
        %322 = vmatprep.subr.mxu0 0.0
        %323 = vmatpush1.msra.mxu0 0.0
        %324 = vmatprep.subr.mxu0 0.0
        %325 = vmatpush1.msra.mxu0 0.0
        %326 = vmatprep.subr.mxu0 0.0
        %327 = vmatpush1.msra.mxu0 0.0
        %328 = vmatprep.subr.mxu0 0.0
        %329 = vmatpush1.msra.mxu0 0.0
        %330 = vmatprep.subr.mxu0 0.0
        %331 = vmatpush1.msra.mxu0 0.0
        %332 = vmatprep.subr.mxu0 0.0
        %333 = vmatpush1.msra.mxu0 0.0
        %334 = vmatprep.subr.mxu0 0.0
        %335 = vmatpush1.msra.mxu0 0.0
        %336 = vmatprep.subr.mxu0 0.0
        %337 = vmatpush1.msra.mxu0 0.0
        %338 = vmatprep.mubr.f32.mxu0 0.0
        %339 = vmatmul.mubr.f32.gmra.mrb[0].mxu0 %v272
        %v340 = vpop.f32.mrb[0].mxu0
        %v341 = vadd.f32 %v268, %v340
        %v342 = vpop.f32.mrb[0].mxu0
        %v343 = vadd.f32 %v268, %v342
        %344 = vdwg.mxu0
        %v345 = vmax.f32 %v341, 0.0
        %v346 = vmax.f32 %v343, 0.0
        %v347 = vld [vmem:[%s3] sm:$0xff]
        %v348 = vld [vmem:[%s4] sm:$0xff]
        %350 = vset.pattern.permute.xlu0 0
        %351 = vperm.xlu0 %350, %v348
        %v352 = vpop.permute.xlu0 %351
        %v355 = vsel %vm270, %v347, 0
        %357 = vmatprep.subr.mxu0 %v346
        %358 = vmatpush1.msra.mxu0 %v345
        %359 = vmatprep.subr.mxu0 0.0
        %360 = vmatpush1.msra.mxu0 0.0
        %361 = vmatprep.subr.mxu0 0.0
        %362 = vmatpush1.msra.mxu0 0.0
        %363 = vmatprep.subr.mxu0 0.0
        %364 = vmatpush1.msra.mxu0 0.0
        %365 = vmatprep.subr.mxu0 0.0
        %366 = vmatpush1.msra.mxu0 0.0
        %367 = vmatprep.subr.mxu0 0.0
        %368 = vmatpush1.msra.mxu0 0.0
        %369 = vmatprep.subr.mxu0 0.0
        %370 = vmatpush1.msra.mxu0 0.0
        %371 = vmatprep.subr.mxu0 0.0
        %372 = vmatpush1.msra.mxu0 0.0
        %373 = vmatprep.subr.mxu0 0.0
        %374 = vmatpush1.msra.mxu0 0.0
        %375 = vmatprep.subr.mxu0 0.0
        %376 = vmatpush1.msra.mxu0 0.0
        %377 = vmatprep.subr.mxu0 0.0
        %378 = vmatpush1.msra.mxu0 0.0
        %379 = vmatprep.subr.mxu0 0.0
        %380 = vmatpush1.msra.mxu0 0.0
        %381 = vmatprep.subr.mxu0 0.0
        %382 = vmatpush1.msra.mxu0 0.0
        %383 = vmatprep.subr.mxu0 0.0
        %384 = vmatpush1.msra.mxu0 0.0
        %385 = vmatprep.subr.mxu0 0.0
        %386 = vmatpush1.msra.mxu0 0.0
        %387 = vmatprep.subr.mxu0 0.0
        %388 = vmatpush1.msra.mxu0 0.0
        %389 = vmatprep.subr.mxu0 0.0
        %390 = vmatpush1.msra.mxu0 0.0
        %391 = vmatprep.subr.mxu0 0.0
        %392 = vmatpush1.msra.mxu0 0.0
        %393 = vmatprep.subr.mxu0 0.0
        %394 = vmatpush1.msra.mxu0 0.0
        %395 = vmatprep.subr.mxu0 0.0
        %396 = vmatpush1.msra.mxu0 0.0
        %397 = vmatprep.subr.mxu0 0.0
        %398 = vmatpush1.msra.mxu0 0.0
        %399 = vmatprep.subr.mxu0 0.0
        %400 = vmatpush1.msra.mxu0 0.0
        %401 = vmatprep.subr.mxu0 0.0
        %402 = vmatpush1.msra.mxu0 0.0
        %403 = vmatprep.subr.mxu0 0.0
        %404 = vmatpush1.msra.mxu0 0.0
        %405 = vmatprep.subr.mxu0 0.0
        %406 = vmatpush1.msra.mxu0 0.0
        %407 = vmatprep.subr.mxu0 0.0
        %408 = vmatpush1.msra.mxu0 0.0
        %409 = vmatprep.subr.mxu0 0.0
        %410 = vmatpush1.msra.mxu0 0.0
        %411 = vmatprep.subr.mxu0 0.0
        %412 = vmatpush1.msra.mxu0 0.0
        %413 = vmatprep.subr.mxu0 0.0
        %414 = vmatpush1.msra.mxu0 0.0
        %415 = vmatprep.subr.mxu0 0.0
        %416 = vmatpush1.msra.mxu0 0.0
        %417 = vmatprep.subr.mxu0 0.0
        %418 = vmatpush1.msra.mxu0 0.0
        %419 = vmatprep.subr.mxu0 0.0
        %420 = vmatpush1.msra.mxu0 0.0
        %421 = vmatprep.mubr.f32.mxu0 0.0
        %422 = vmatmul.mubr.f32.gmra.mrb[0].mxu0 %v355
        %v423 = vpop.f32.mrb[0].mxu0
        %v424 = vadd.f32 %v352, %v423
        %v425 = vpop.f32.mrb[0].mxu0
        %v426 = vadd.f32 %v352, %v425
        %427 = vdwg.mxu0
        %v428 = vadd.f32 %v424, %v261
        %v429 = vadd.f32 %v426, %v262
        %430 = vst [vmem:[%s258] sm:$0xff] %v428
        %431 = vst [vmem:[%s258 + $0x8] sm:$0xff] %v429
        %s432 = sand.u32 %s156, 1
        %s433 = scalar_lea.sflag [#allocation4], %s432
        %s434 = sand.u32 %s156, 1
        %s435 = smul.addr %s434, 16
        %s436 = scalar_lea.vmem [#allocation5], %s435
        // Predicated region
        $region45: #{tpu_custom_call.1} parent=39 // pred_check
          %p437 = pneg %p166
        $region46: #{tpu_custom_call.1} parent=39 // pred_check_branch
          %439 = sbr.rel (%p437) target = $region48
        $region47: #{tpu_custom_call.1} parent=39 // pred_region
          %s440 = smul.u32 2, %s27
          %s442 = ssub.s32 256, 256
          %443 = vsyncadd %s433, %s442
          %s444 = smul.addr %s26, 2
          %s445 = sadd.s32 %s440, %s444
          %s446 = smul.addr %s445, 128
          %s447 = scalar_lea.hbm %s5, %s446
          %s449 = sshll.u32 %s436, 4
          %s450 = int_to_ptr.vmem [resolvable:$true] %s449
          %452 = dma.vmem_to_hbm [thread:$0]  %s450, 256, %s447, %s433
        $region48: #{tpu_custom_call.1} parent=39 // pred_fallthru
          _
      $region40: #{tpu_custom_call.1} parent=5 // pred_fallthru
        _
      %p453 = scmp.le.s32.totalorder 2, %s17
      // Predicated region
      $region49: #{tpu_custom_call.1} parent=5 // pred_check
        %p454 = pneg %p453
      $region50: #{tpu_custom_call.1} parent=5 // pred_check_branch
        %456 = sbr.rel (%p454) target = $region52
      $region51: #{tpu_custom_call.1} parent=5 // pred_region
        %s457 = ssub.s32 %s17, 2
        // Predicated region
        $region53: #{tpu_custom_call.1} parent=51 // pred_check
          %p458 = pneg %p172
        $region54: #{tpu_custom_call.1} parent=51 // pred_check_branch
          %460 = sbr.rel (%p458) target = $region56
        $region55: #{tpu_custom_call.1} parent=51 // pred_region
          %s461 = sand.u32 %s157, 1
          %s462 = scalar_lea.sflag [#allocation4], %s461
          %s463 = sand.u32 %s157, 1
          %s464 = smul.addr %s463, 16
          %s465 = scalar_lea.vmem [#allocation5], %s464
          %466 = dma.done %s462, 256
        $region56: #{tpu_custom_call.1} parent=51 // pred_fallthru
          _
      $region52: #{tpu_custom_call.1} parent=5 // pred_fallthru
        _
    $region6: #{tpu_custom_call.1} parent=1 // loop_footer
      %s21 = sadd.s32 1, %s17
    $region7: #{tpu_custom_call.1} parent=1 // loop_footer_branch
      %16 = sbr.rel target = $region3
    $region8: #{tpu_custom_call.1} parent=1 // loop_exit
      _
    %467 = vsyncpa [#allocation3], 1
    %s468 = scalar_lea.sflag [#allocation3], 1
    %469 = vsyncpa %s468, 1
    %470 = vsyncpa [#allocation4], 1
    %s471 = scalar_lea.sflag [#allocation4], 1
    %472 = vsyncpa %s471, 1

</llo_original>
